<compile_context>
chip_gen: v5e
topology: v5e:2x2
jax: 0.10.0
libtpu: 0.0.40
codegen_flags: <defaults>
</compile_context>

<pallas_src>
import jax
import jax.numpy as jnp
from jax.experimental import pallas as pl
from jax.experimental.pallas import tpu as pltpu


def _round_up(x, m):
    return ((x + m - 1) // m) * m


def _make_fusion_kernel(dims, scaled):
    """Kernel closed over static per-modal feature dims and scale flags.

    kernel(w_ref, x_ref_0, ..., x_ref_{M-1}, o_ref)
      w_ref   : SMEM [M] f32          (scalar-prefetched effective weights)
      x_ref_m : VMEM (tn, dims[m])    row tile of modal m
      o_ref   : VMEM (tn, sum(dims))  row tile of the concatenated output
    """
    offsets = []
    acc = 0
    for d in dims:
        offsets.append(acc)
        acc += d

    def kernel(w_ref, *refs):
        o_ref = refs[-1]
        for m, x_ref in enumerate(refs[:-1]):
            lo, d = offsets[m], dims[m]
            x = x_ref[...]
            if scaled[m]:
                # Cast the f32 scalar down so bf16 inputs multiply in bf16.
                x = x * w_ref[m].astype(x_ref.dtype)
            o_ref[:, lo:lo + d] = x.astype(o_ref.dtype)

    return kernel


def multimodal_fusion(modal_list, weight=None, with_weight=1, row_tile=None):
    """JAX/Pallas equivalent of MultiModalFusion.forward.

    modal_list : list of jnp.ndarray [N, D_m] or None (shared N, ragged D_m ok)
    weight     : jnp.ndarray [modal_num] f32 (ignored if with_weight == 0)
    row_tile   : optional cap on the row tile; None = derive from VMEM budget.
    """
    valid = [m for m in modal_list if m is not None]
    if not valid:
        # Matches torch.zeros(1, 128) in the reference module.
        return jnp.zeros((1, 128), dtype=jnp.float32)

    n_valid = len(valid)
    N = int(valid[0].shape[0])
    dims = tuple(int(m.shape[-1]) for m in valid)
    d_total = sum(dims)
    out_dtype = valid[0].dtype

    # torch.cat would raise on mixed dtypes / mismatched leading dims; mirror it.
    for m in valid:
        if m.dtype != out_dtype:
            raise ValueError("all modal tensors must share a dtype")
        if int(m.shape[0]) != N:
            raise ValueError("all modal tensors must share the leading dim")

    # --- Pure-concat path: let XLA handle it (fusable, no forced materialize).
    use_weight = bool(with_weight) and (weight is not None) and int(weight.shape[0]) > 0
    if not use_weight:
        return jnp.concatenate(valid, axis=-1)

    # Effective per-modal weights: the torch loop consumes weight[0], weight[1],
    # ... over the valid modals; valid modals past len(weight) are unscaled.
    n_use = min(n_valid, int(weight.shape[0]))
    scaled = tuple(i < n_use for i in range(n_valid))
    w_eff = jnp.ones((n_valid,), dtype=jnp.float32)
    w_eff = w_eff.at[:n_use].set(weight[:n_use].astype(jnp.float32))

    # --- Row tile derived from d_total / dtype and a VMEM pipeline budget.
    itemsize = jnp.dtype(out_dtype).itemsize
    pack = max(8, 32 // itemsize)            # sublane pack: 8 f32, 16 bf16, 32 int8
    target_pipe_bytes = 24 << 20             # double-buffered (inputs + output) slab
    bytes_per_row = 2 * d_total * itemsize   # one row of inputs + one row of output
    tn = max(pack, (target_pipe_bytes // (2 * bytes_per_row)) // pack * pack)
    if row_tile is not None:
        tn = min(tn, max(pack, (int(row_tile) // pack) * pack))

    if tn >= N:
        if N <= pack:
            tn = N                           # full-extent block (always legal)
        else:
            # >=2 grid steps when N permits, so both v7x TensorCores run.
            half = _round_up(-(-N // 2), pack)
            tn = half if half < N else _round_up(N, pack)

    grid = (pl.cdiv(N, tn),)

    # Explicit scoped-VMEM limit: computed pipeline footprint + headroom,
    # clamped well under v7x's 64 MiB physical per-TC VMEM.
    pipe_bytes = 4 * tn * d_total * itemsize
    vmem_limit = int(min(48 << 20, max(16 << 20, pipe_bytes + (4 << 20))))

    in_specs = [pl.BlockSpec((tn, d), lambda i, w: (i, 0)) for d in dims]
    out_specs = pl.BlockSpec((tn, d_total), lambda i, w: (i, 0))

    grid_spec = pltpu.PrefetchScalarGridSpec(
        num_scalar_prefetch=1,               # w_eff lands in SMEM
        grid=grid,
        in_specs=in_specs,
        out_specs=out_specs,
    )

    return pl.pallas_call(
        _make_fusion_kernel(dims, scaled),
        out_shape=jax.ShapeDtypeStruct((N, d_total), out_dtype),
        grid_spec=grid_spec,
        compiler_params=pltpu.CompilerParams(
            dimension_semantics=("parallel",),
            vmem_limit_bytes=vmem_limit,
        ),
    )(w_eff, *valid)


def _reference(modal_list, weight, with_weight=1):
    """Pure-JAX mirror of the PyTorch forward (weight cast to modal dtype)."""
    valid = [m for m in modal_list if m is not None]
    if not valid:
        return jnp.zeros((1, 128), dtype=jnp.float32)
    if with_weight and weight is not None:
        out = []
        wi = 0
        for m in modal_list:
            if m is not None:
                if wi < weight.shape[0]:
                    out.append(weight[wi].astype(m.dtype) * m)
                    wi += 1
                else:
                    out.append(m)
        return jnp.concatenate(out, axis=-1)
    return jnp.concatenate(valid, axis=-1)


if __name__ == "__main__":
    key = jax.random.PRNGKey(0)

    # ---- Test 1: module default shape (modal_num=6, one None), with_weight=1
    modal_num = 6
    N, D = 8, 128
    keys = jax.random.split(key, modal_num)
    weight = jnp.ones((modal_num,), dtype=jnp.float32) + 0.1 * jnp.arange(
        modal_num, dtype=jnp.float32
    )
    modal_list = []
    for i in range(modal_num):
        if i == 3:
            modal_list.append(None)
        else:
            modal_list.append(jax.random.normal(keys[i], (N, D), dtype=jnp.float32))

    out1 = jax.block_until_ready(multimodal_fusion(modal_list, weight, with_weight=1))
    ref1 = _reference(modal_list, weight, with_weight=1)
    assert out1.shape == ref1.shape, (out1.shape, ref1.shape)
    assert jnp.allclose(out1, ref1, atol=1e-6, rtol=1e-6)

    # ---- Test 2: ragged feature dims, auto tile (forces >=2 grid steps),
    #              short weight vector (3rd modal statically unscaled)
    N2 = 48
    dims2 = (128, 256, 128)
    keys2 = jax.random.split(jax.random.PRNGKey(1), len(dims2))
    modal_list2 = [
        jax.random.normal(k, (N2, d), dtype=jnp.float32)
        for k, d in zip(keys2, dims2)
    ]
    weight2 = jnp.array([0.5, 2.0], dtype=jnp.float32)
    out2 = jax.block_until_ready(multimodal_fusion(modal_list2, weight2, with_weight=1))
    ref2 = _reference(modal_list2, weight2, with_weight=1)
    assert out2.shape == ref2.shape, (out2.shape, ref2.shape)
    assert jnp.allclose(out2, ref2, atol=1e-6, rtol=1e-6)

    # ---- Test 3: explicit (non-pack-multiple) row_tile cap is rounded safely
    out2b = jax.block_until_ready(
        multimodal_fusion(modal_list2, weight2, with_weight=1, row_tile=20)
    )
    assert jnp.allclose(out2b, ref2, atol=1e-6, rtol=1e-6)

    # ---- Test 4: with_weight=0 path (pure concat, short-circuits to XLA)
    out3 = jax.block_until_ready(multimodal_fusion(modal_list2, None, with_weight=0))
    ref3 = _reference(modal_list2, None, with_weight=0)
    assert jnp.allclose(out3, ref3, atol=1e-6, rtol=1e-6)

    # ---- Test 5: bf16 modals (sublane pack 16, >=2-step row grid)
    N5, D5 = 32, 256
    keys5 = jax.random.split(jax.random.PRNGKey(2), 2)
    modal_list5 = [
        jax.random.normal(k, (N5, D5), dtype=jnp.float32).astype(jnp.bfloat16)
        for k in keys5
    ]
    weight5 = jnp.array([1.5, 0.25], dtype=jnp.float32)
    out5 = jax.block_until_ready(multimodal_fusion(modal_list5, weight5, with_weight=1))
    ref5 = _reference(modal_list5, weight5, with_weight=1)
    assert out5.dtype == jnp.bfloat16 and out5.shape == ref5.shape
    assert jnp.allclose(out5.astype(jnp.float32), ref5.astype(jnp.float32),
                        atol=1e-2, rtol=1e-2)

    # ---- Test 6: empty modal list
    out6 = multimodal_fusion([None, None], weight, with_weight=1)
    assert out6.shape == (1, 128) and jnp.all(out6 == 0)

    print("KERNEL_OK")
</pallas_src>

<mosaic_0001>
module attributes {stable_mosaic.version = 11 : i64} {
  func.func @kernel(%arg0: i32, %arg1: memref<5xf32, #tpu.memory_space<smem>>, %arg2: memref<8x128xf32, #tpu.memory_space<vmem>>, %arg3: memref<8x128xf32, #tpu.memory_space<vmem>>, %arg4: memref<8x128xf32, #tpu.memory_space<vmem>>, %arg5: memref<8x128xf32, #tpu.memory_space<vmem>>, %arg6: memref<8x128xf32, #tpu.memory_space<vmem>>, %arg7: memref<8x640xf32, #tpu.memory_space<vmem>>) attributes {dimension_semantics = [#tpu.dimension_semantics<parallel>], iteration_bounds = array<i64: 1>, scalar_prefetch = 1 : i64, scratch_operands = 0 : i64, tpu.core_type = #tpu.core_type<tc>, window_params = [{transform_indices = @transform_0, window_bounds = array<i64: 8, 128>}, {transform_indices = @transform_1, window_bounds = array<i64: 8, 128>}, {transform_indices = @transform_2, window_bounds = array<i64: 8, 128>}, {transform_indices = @transform_3, window_bounds = array<i64: 8, 128>}, {transform_indices = @transform_4, window_bounds = array<i64: 8, 128>}, {transform_indices = @transform_5, window_bounds = array<i64: 8, 640>}]} {
    %c0 = arith.constant 0 : index
    %c0_0 = arith.constant 0 : index
    %0 = vector.load %arg2[%c0, %c0_0] : memref<8x128xf32, #tpu.memory_space<vmem>>, vector<8x128xf32>
    %c0_1 = arith.constant 0 : index
    %1 = memref.load %arg1[%c0_1] : memref<5xf32, #tpu.memory_space<smem>>
    %2 = vector.broadcast %1 : f32 to vector<8x128xf32>
    %3 = arith.mulf %0, %2 : vector<8x128xf32>
    %c0_2 = arith.constant 0 : index
    %c0_3 = arith.constant 0 : index
    %4 = vector.load %arg7[%c0_2, %c0_3] : memref<8x640xf32, #tpu.memory_space<vmem>>, vector<8x128xf32>
    tpu.vector_store %arg7[%c0_2, %c0_3], %3 {strides = array<i32>} : memref<8x640xf32, #tpu.memory_space<vmem>>, vector<8x128xf32>,
    %c0_4 = arith.constant 0 : index
    %c0_5 = arith.constant 0 : index
    %5 = vector.load %arg3[%c0_4, %c0_5] : memref<8x128xf32, #tpu.memory_space<vmem>>, vector<8x128xf32>
    %c1 = arith.constant 1 : index
    %6 = memref.load %arg1[%c1] : memref<5xf32, #tpu.memory_space<smem>>
    %7 = vector.broadcast %6 : f32 to vector<8x128xf32>
    %8 = arith.mulf %5, %7 : vector<8x128xf32>
    %c0_6 = arith.constant 0 : index
    %c128 = arith.constant 128 : index
    %9 = vector.load %arg7[%c0_6, %c128] : memref<8x640xf32, #tpu.memory_space<vmem>>, vector<8x128xf32>
    tpu.vector_store %arg7[%c0_6, %c128], %8 {strides = array<i32>} : memref<8x640xf32, #tpu.memory_space<vmem>>, vector<8x128xf32>,
    %c0_7 = arith.constant 0 : index
    %c0_8 = arith.constant 0 : index
    %10 = vector.load %arg4[%c0_7, %c0_8] : memref<8x128xf32, #tpu.memory_space<vmem>>, vector<8x128xf32>
    %c2 = arith.constant 2 : index
    %11 = memref.load %arg1[%c2] : memref<5xf32, #tpu.memory_space<smem>>
    %12 = vector.broadcast %11 : f32 to vector<8x128xf32>
    %13 = arith.mulf %10, %12 : vector<8x128xf32>
    %c0_9 = arith.constant 0 : index
    %c256 = arith.constant 256 : index
    %14 = vector.load %arg7[%c0_9, %c256] : memref<8x640xf32, #tpu.memory_space<vmem>>, vector<8x128xf32>
    tpu.vector_store %arg7[%c0_9, %c256], %13 {strides = array<i32>} : memref<8x640xf32, #tpu.memory_space<vmem>>, vector<8x128xf32>,
    %c0_10 = arith.constant 0 : index
    %c0_11 = arith.constant 0 : index
    %15 = vector.load %arg5[%c0_10, %c0_11] : memref<8x128xf32, #tpu.memory_space<vmem>>, vector<8x128xf32>
    %c3 = arith.constant 3 : index
    %16 = memref.load %arg1[%c3] : memref<5xf32, #tpu.memory_space<smem>>
    %17 = vector.broadcast %16 : f32 to vector<8x128xf32>
    %18 = arith.mulf %15, %17 : vector<8x128xf32>
    %c0_12 = arith.constant 0 : index
    %c384 = arith.constant 384 : index
    %19 = vector.load %arg7[%c0_12, %c384] : memref<8x640xf32, #tpu.memory_space<vmem>>, vector<8x128xf32>
    tpu.vector_store %arg7[%c0_12, %c384], %18 {strides = array<i32>} : memref<8x640xf32, #tpu.memory_space<vmem>>, vector<8x128xf32>,
    %c0_13 = arith.constant 0 : index
    %c0_14 = arith.constant 0 : index
    %20 = vector.load %arg6[%c0_13, %c0_14] : memref<8x128xf32, #tpu.memory_space<vmem>>, vector<8x128xf32>
    %c4 = arith.constant 4 : index
    %21 = memref.load %arg1[%c4] : memref<5xf32, #tpu.memory_space<smem>>
    %22 = vector.broadcast %21 : f32 to vector<8x128xf32>
    %23 = arith.mulf %20, %22 : vector<8x128xf32>
    %c0_15 = arith.constant 0 : index
    %c512 = arith.constant 512 : index
    %24 = vector.load %arg7[%c0_15, %c512] : memref<8x640xf32, #tpu.memory_space<vmem>>, vector<8x128xf32>
    tpu.vector_store %arg7[%c0_15, %c512], %23 {strides = array<i32>} : memref<8x640xf32, #tpu.memory_space<vmem>>, vector<8x128xf32>,
    return
  }
  func.func @transform_0(%arg0: i32, %arg1: memref<5xf32, #tpu.memory_space<smem>>) -> (i32, i32) {
    %c0_i32 = arith.constant 0 : i32
    %c0_i32_0 = arith.constant 0 : i32
    return %arg0, %c0_i32 : i32, i32
  }
  func.func @transform_1(%arg0: i32, %arg1: memref<5xf32, #tpu.memory_space<smem>>) -> (i32, i32) {
    %c0_i32 = arith.constant 0 : i32
    %c0_i32_0 = arith.constant 0 : i32
    return %arg0, %c0_i32 : i32, i32
  }
  func.func @transform_2(%arg0: i32, %arg1: memref<5xf32, #tpu.memory_space<smem>>) -> (i32, i32) {
    %c0_i32 = arith.constant 0 : i32
    %c0_i32_0 = arith.constant 0 : i32
    return %arg0, %c0_i32 : i32, i32
  }
  func.func @transform_3(%arg0: i32, %arg1: memref<5xf32, #tpu.memory_space<smem>>) -> (i32, i32) {
    %c0_i32 = arith.constant 0 : i32
    %c0_i32_0 = arith.constant 0 : i32
    return %arg0, %c0_i32 : i32, i32
  }
  func.func @transform_4(%arg0: i32, %arg1: memref<5xf32, #tpu.memory_space<smem>>) -> (i32, i32) {
    %c0_i32 = arith.constant 0 : i32
    %c0_i32_0 = arith.constant 0 : i32
    return %arg0, %c0_i32 : i32, i32
  }
  func.func @transform_5(%arg0: i32, %arg1: memref<5xf32, #tpu.memory_space<smem>>) -> (i32, i32) {
    %c0_i32 = arith.constant 0 : i32
    %c0_i32_0 = arith.constant 0 : i32
    return %arg0, %c0_i32 : i32, i32
  }
}

</mosaic_0001>

<llo_original>
// kernel: tpu_custom_call.1
$region0: #{tpu_custom_call.1}
  #allocation0 [shape = 'u32[]', space=smem, size = 0x4, offset = 0x4, fixed_abs, tag = 'smem constant byte address 0x4 - core index']
  #allocation1 [shape = 'u32[72,128]{1,0:T(1,128)}', space=vmem, size = 0x9000, scoped, tag = 'internal scratch']
  #allocation2 [shape = 's32[1]{0}', space=sflag, size = 0x4, scoped, tag = 'scoped memory for tpu_custom_call.1']
  #allocation3 [shape = 'u8[512]{0}', space=smem, size = 0x200, scoped, tag = 'prefetched SMEM operand 0']
  %s0 = inlined_call_operand.hbm [shape: f32[5], index: 0, kind: input, shape index: {}]
  %s1 = inlined_call_operand.hbm [shape: f32[8,128], index: 1, kind: input, shape index: {}]
  %s2 = inlined_call_operand.hbm [shape: f32[8,128], index: 2, kind: input, shape index: {}]
  %s3 = inlined_call_operand.hbm [shape: f32[8,128], index: 3, kind: input, shape index: {}]
  %s4 = inlined_call_operand.hbm [shape: f32[8,128], index: 4, kind: input, shape index: {}]
  %s5 = inlined_call_operand.hbm [shape: f32[8,128], index: 5, kind: input, shape index: {}]
  %s6 = inlined_call_operand.hbm [shape: f32[8,640], index: 6, kind: output, shape index: {}]
  %s7 = sld [smem:[#allocation0]]
  $region50: #{tpu_custom_call.1} parent=0
    _
  %s9 = ssub.s32 1, %s7
  %s10 = scalar_select 0, %s9, %s7
  %s12 = sshll.u32 %s0, 4
  %s13 = int_to_ptr.hbm [resolvable:$true] %s12
  %15 = dma.hbm_to_smem %s13, 16, [#allocation3], [#allocation2]
  %17 = dma.done [#allocation2], 16
  %18 = sfence
  $region1: #{tpu_custom_call.1} parent=0
    #allocation4 [shape = 'u8[4096]{0}', space=vmem, size = 0x1000, scoped, tag = 'input window, operand 1, single buffered']
    #allocation5 [shape = 's32[1]{0}', space=sflag, size = 0x4, scoped, tag = 'scoped memory for tpu_custom_call.1']
    #allocation6 [shape = 's32[1]{0}', space=sflag, size = 0x4, scoped, tag = 'scoped memory for tpu_custom_call.1']
    #allocation7 [shape = 'u8[4096]{0}', space=vmem, size = 0x1000, scoped, tag = 'input window, operand 2, single buffered']
    #allocation8 [shape = 's32[1]{0}', space=sflag, size = 0x4, scoped, tag = 'scoped memory for tpu_custom_call.1']
    #allocation9 [shape = 'u8[4096]{0}', space=vmem, size = 0x1000, scoped, tag = 'input window, operand 3, single buffered']
    #allocation10 [shape = 'u8[4096]{0}', space=vmem, size = 0x1000, scoped, tag = 'input window, operand 4, single buffered']
    #allocation11 [shape = 's32[1]{0}', space=sflag, size = 0x4, scoped, tag = 'scoped memory for tpu_custom_call.1']
    #allocation12 [shape = 'u8[4096]{0}', space=vmem, size = 0x1000, scoped, tag = 'input window, operand 5, single buffered']
    #allocation13 [shape = 'u8[20480]{0}', space=vmem, size = 0x5000, scoped, tag = 'output window, operand 0, single buffered']
    %19 = vsyncpa [#allocation5], 0
    %20 = vsyncpa [#allocation8], 0
    %21 = vsyncpa [#allocation11], 0
    %22 = vsyncpa [#allocation6], 0
    // Predicated region
    $region2: #{tpu_custom_call.1} parent=1 // pred_check
      _
    $region3: #{tpu_custom_call.1} parent=1 // pred_check_branch
      %24 = sbr.rel (0) target = $region5
    $region4: #{tpu_custom_call.1} parent=1 // pred_region
      %26 = vsyncadd [#allocation5], 0
      %s28 = sshll.u32 %s1, 4
      %s29 = int_to_ptr.hbm [resolvable:$true] %s28
      %s30 = sshll.u32 [#allocation4], 4
      %s31 = int_to_ptr.vmem [resolvable:$true] %s30
      %33 = dma.hbm_to_vmem [thread:$0]  %s29, 128, %s31, [#allocation5]
    $region5: #{tpu_custom_call.1} parent=1 // pred_fallthru
      _
    // Predicated region
    $region6: #{tpu_custom_call.1} parent=1 // pred_check
      _
    $region7: #{tpu_custom_call.1} parent=1 // pred_check_branch
      %35 = sbr.rel (0) target = $region9
    $region8: #{tpu_custom_call.1} parent=1 // pred_region
      %37 = vsyncadd [#allocation8], 0
      %s39 = sshll.u32 %s2, 4
      %s40 = int_to_ptr.hbm [resolvable:$true] %s39
      %s41 = sshll.u32 [#allocation7], 4
      %s42 = int_to_ptr.vmem [resolvable:$true] %s41
      %44 = dma.hbm_to_vmem [thread:$0]  %s40, 128, %s42, [#allocation8]
    $region9: #{tpu_custom_call.1} parent=1 // pred_fallthru
      _
    // Predicated region
    $region10: #{tpu_custom_call.1} parent=1 // pred_check
      _
    $region11: #{tpu_custom_call.1} parent=1 // pred_check_branch
      %46 = sbr.rel (0) target = $region13
    $region12: #{tpu_custom_call.1} parent=1 // pred_region
      %48 = vsyncadd [#allocation8], 0
      %s50 = sshll.u32 %s3, 4
      %s51 = int_to_ptr.hbm [resolvable:$true] %s50
      %s52 = sshll.u32 [#allocation9], 4
      %s53 = int_to_ptr.vmem [resolvable:$true] %s52
      %55 = dma.hbm_to_vmem [thread:$0]  %s51, 128, %s53, [#allocation8]
    $region13: #{tpu_custom_call.1} parent=1 // pred_fallthru
      _
    // Predicated region
    $region14: #{tpu_custom_call.1} parent=1 // pred_check
      _
    $region15: #{tpu_custom_call.1} parent=1 // pred_check_branch
      %57 = sbr.rel (0) target = $region17
    $region16: #{tpu_custom_call.1} parent=1 // pred_region
      %59 = vsyncadd [#allocation11], 0
      %s61 = sshll.u32 %s4, 4
      %s62 = int_to_ptr.hbm [resolvable:$true] %s61
      %s63 = sshll.u32 [#allocation10], 4
      %s64 = int_to_ptr.vmem [resolvable:$true] %s63
      %66 = dma.hbm_to_vmem [thread:$0]  %s62, 128, %s64, [#allocation11]
    $region17: #{tpu_custom_call.1} parent=1 // pred_fallthru
      _
    // Predicated region
    $region18: #{tpu_custom_call.1} parent=1 // pred_check
      _
    $region19: #{tpu_custom_call.1} parent=1 // pred_check_branch
      %68 = sbr.rel (0) target = $region21
    $region20: #{tpu_custom_call.1} parent=1 // pred_region
      %70 = vsyncadd [#allocation11], 0
      %s72 = sshll.u32 %s5, 4
      %s73 = int_to_ptr.hbm [resolvable:$true] %s72
      %s74 = sshll.u32 [#allocation12], 4
      %s75 = int_to_ptr.vmem [resolvable:$true] %s74
      %77 = dma.hbm_to_vmem [thread:$0]  %s73, 128, %s75, [#allocation11]
    $region21: #{tpu_custom_call.1} parent=1 // pred_fallthru
      _
    // Predicated region
    $region22: #{tpu_custom_call.1} parent=1 // pred_check
      _
    $region23: #{tpu_custom_call.1} parent=1 // pred_check_branch
      %79 = sbr.rel (0) target = $region25
    $region24: #{tpu_custom_call.1} parent=1 // pred_region
      %81 = dma.done [#allocation5], 128
    $region25: #{tpu_custom_call.1} parent=1 // pred_fallthru
      _
    // Predicated region
    $region26: #{tpu_custom_call.1} parent=1 // pred_check
      _
    $region27: #{tpu_custom_call.1} parent=1 // pred_check_branch
      %83 = sbr.rel (0) target = $region29
    $region28: #{tpu_custom_call.1} parent=1 // pred_region
      %85 = dma.done [#allocation8], 128
    $region29: #{tpu_custom_call.1} parent=1 // pred_fallthru
      _
    // Predicated region
    $region30: #{tpu_custom_call.1} parent=1 // pred_check
      _
    $region31: #{tpu_custom_call.1} parent=1 // pred_check_branch
      %87 = sbr.rel (0) target = $region33
    $region32: #{tpu_custom_call.1} parent=1 // pred_region
      %89 = dma.done [#allocation8], 128
    $region33: #{tpu_custom_call.1} parent=1 // pred_fallthru
      _
    // Predicated region
    $region34: #{tpu_custom_call.1} parent=1 // pred_check
      _
    $region35: #{tpu_custom_call.1} parent=1 // pred_check_branch
      %91 = sbr.rel (0) target = $region37
    $region36: #{tpu_custom_call.1} parent=1 // pred_region
      %93 = dma.done [#allocation11], 128
    $region37: #{tpu_custom_call.1} parent=1 // pred_fallthru
      _
    // Predicated region
    $region38: #{tpu_custom_call.1} parent=1 // pred_check
      _
    $region39: #{tpu_custom_call.1} parent=1 // pred_check_branch
      %95 = sbr.rel (0) target = $region41
    $region40: #{tpu_custom_call.1} parent=1 // pred_region
      %97 = dma.done [#allocation11], 128
    $region41: #{tpu_custom_call.1} parent=1 // pred_fallthru
      _
    %v98 = vld [vmem:[#allocation4] sm:$0xff]
    %s99 = sld [smem:[#allocation3]]
    %v100 = vstv %s99
    %v101 = vmul.f32 %v98, %v100
    %102 = vst [vmem:[#allocation13] sm:$0xff] %v101
    %v103 = vld [vmem:[#allocation7] sm:$0xff]
    %s104 = sld [smem:[#allocation3 + $0x1]]
    %v105 = vstv %s104
    %v106 = vmul.f32 %v103, %v105
    %107 = vst [vmem:[#allocation13 + $0x8] sm:$0xff] %v106
    %v108 = vld [vmem:[#allocation9] sm:$0xff]
    %s109 = sld [smem:[#allocation3 + $0x2]]
    %v110 = vstv %s109
    %v111 = vmul.f32 %v108, %v110
    %112 = vst [vmem:[#allocation13 + $0x10] sm:$0xff] %v111
    %v113 = vld [vmem:[#allocation10] sm:$0xff]
    %s114 = sld [smem:[#allocation3 + $0x3]]
    %v115 = vstv %s114
    %v116 = vmul.f32 %v113, %v115
    %117 = vst [vmem:[#allocation13 + $0x18] sm:$0xff] %v116
    %v118 = vld [vmem:[#allocation12] sm:$0xff]
    %s119 = sld [smem:[#allocation3 + $0x4]]
    %v120 = vstv %s119
    %v121 = vmul.f32 %v118, %v120
    %122 = vst [vmem:[#allocation13 + $0x20] sm:$0xff] %v121
    // Predicated region
    $region42: #{tpu_custom_call.1} parent=1 // pred_check
      _
    $region43: #{tpu_custom_call.1} parent=1 // pred_check_branch
      %124 = sbr.rel (0) target = $region45
    $region44: #{tpu_custom_call.1} parent=1 // pred_region
      %126 = vsyncadd [#allocation6], 0
      %s128 = sshll.u32 [#allocation13], 4
      %s129 = int_to_ptr.vmem [resolvable:$true] %s128
      %s130 = sshll.u32 %s6, 4
      %s131 = int_to_ptr.hbm [resolvable:$true] %s130
      %133 = dma.vmem_to_hbm [thread:$0]  %s129, 640, %s131, [#allocation6]
    $region45: #{tpu_custom_call.1} parent=1 // pred_fallthru
      _
    // Predicated region
    $region46: #{tpu_custom_call.1} parent=1 // pred_check
      _
    $region47: #{tpu_custom_call.1} parent=1 // pred_check_branch
      %135 = sbr.rel (0) target = $region49
    $region48: #{tpu_custom_call.1} parent=1 // pred_region
      %137 = dma.done [#allocation6], 640
    $region49: #{tpu_custom_call.1} parent=1 // pred_fallthru
      _
    %138 = vsyncpa [#allocation5], 1
    %139 = vsyncpa [#allocation8], 1
    %140 = vsyncpa [#allocation11], 1
    %141 = vsyncpa [#allocation6], 1

</llo_original>
